<compile_context>
chip_gen: v6e
topology: v6e:2x2x1
jax: 0.10.0
libtpu: 0.0.40
codegen_flags: <defaults>
</compile_context>

<pallas_src>
import jax
import jax.numpy as jnp
from jax.experimental import pallas as pl
from jax.experimental.pallas import tpu as pltpu


def _round_up(n, m):
    return ((n + m - 1) // m) * m


def _numeric_embedding_kernel(x_ref, w_ref, b_ref, o_ref):
    """One batch tile of y = x @ W_t + b.

    x_ref: (TB, D_in)   w_ref: (D_in, D_emb)   b_ref: (1, D_emb)   o_ref: (TB, D_emb)
    """
    d_in = x_ref.shape[1]
    x = x_ref[...]
    if d_in <= 32:
        # Tiny contraction: the MXU would be mostly idle, so do an unrolled
        # broadcast-FMA on the VPU — batch on sublanes, embedding on lanes.
        # VALU work is free filler in this HBM-writeback-bound kernel.
        acc = jnp.broadcast_to(b_ref[...].astype(jnp.float32), o_ref.shape)
        for k in range(d_in):  # static unroll, d_in <= 32
            acc = acc + x[:, k:k + 1].astype(jnp.float32) * w_ref[k:k + 1, :].astype(jnp.float32)
        o_ref[...] = acc.astype(o_ref.dtype)
    else:
        acc = jnp.dot(x, w_ref[...], preferred_element_type=jnp.float32)
        o_ref[...] = (acc + b_ref[...].astype(jnp.float32)).astype(o_ref.dtype)


def prepare_numeric_embedding_params(weight, bias):
    """One-time re-layout of nn.Linear parameters for the kernel.

    weight: (embedding_dim, input_dim)  (PyTorch layout)
    bias:   (embedding_dim,)
    Returns (w_kernel, b_kernel): contraction axis first, bias as (1, E).
    No lane padding — the output is stored unpadded.
    """
    return jnp.asarray(weight).T, jnp.asarray(bias).reshape(1, -1)


def numeric_embedding(x, w_kernel, b_kernel, *, block_rows=4096):
    """Pallas equivalent of nn.Linear(input_dim, embedding_dim)(x).

    x:        (batch, input_dim)        float32
    w_kernel: (input_dim, embedding_dim) from prepare_numeric_embedding_params
    b_kernel: (1, embedding_dim)
    returns   (batch, embedding_dim)
    """
    batch, input_dim = x.shape
    embedding_dim = w_kernel.shape[1]

    # Batch tile choice:
    #  - small batch: one full-array tile (always layout-legal, no step overhead)
    #  - otherwise: >=4 grid steps so v7x's two TensorCores each get >=2
    #    pipelined steps; tile rows are a multiple of 8 (sublane tiling) and
    #    capped at block_rows.  Partial final tiles use standard Pallas masking.
    if batch <= 512:
        tb = batch
    else:
        tb = min(block_rows, max(8, _round_up(pl.cdiv(batch, 4), 8)))
        tb = min(tb, batch)
    grid = (pl.cdiv(batch, tb),)

    itemsize = x.dtype.itemsize
    flops = 2 * batch * input_dim * embedding_dim
    bytes_accessed = (
        x.size * itemsize
        + w_kernel.size * w_kernel.dtype.itemsize   # fetched once (constant index_map)
        + b_kernel.size * b_kernel.dtype.itemsize
        + batch * embedding_dim * itemsize          # unpadded output writeback
    )

    return pl.pallas_call(
        _numeric_embedding_kernel,
        out_shape=jax.ShapeDtypeStruct((batch, embedding_dim), x.dtype),
        grid=grid,
        in_specs=[
            pl.BlockSpec((tb, input_dim), lambda i: (i, 0)),             # x: tiled over batch
            pl.BlockSpec((input_dim, embedding_dim), lambda i: (0, 0)),  # W: VMEM-resident
            pl.BlockSpec((1, embedding_dim), lambda i: (0, 0)),          # b: VMEM-resident
        ],
        out_specs=pl.BlockSpec((tb, embedding_dim), lambda i: (i, 0)),
        compiler_params=pltpu.CompilerParams(
            dimension_semantics=("parallel",),  # batch tiles shard across TCs on v7x
        ),
        cost_estimate=pl.CostEstimate(
            flops=flops, transcendentals=0, bytes_accessed=bytes_accessed),
    )(x, w_kernel, b_kernel)


if __name__ == "__main__":
    key = jax.random.PRNGKey(0)
    k_x, k_w, k_b = jax.random.split(key, 3)

    input_dim = 4          # numeric covariates per time-step
    embedding_dim = 32
    batch = 1024           # exercises the multi-tile grid (4 tiles of 256 rows)

    x = jax.random.normal(k_x, (batch, input_dim), dtype=jnp.float32)

    # Deterministic parameter init mimicking nn.Linear default (uniform ±1/sqrt(fan_in)).
    limit = 1.0 / jnp.sqrt(jnp.float32(input_dim))
    weight = jax.random.uniform(
        k_w, (embedding_dim, input_dim), minval=-limit, maxval=limit, dtype=jnp.float32
    )
    bias = jax.random.uniform(
        k_b, (embedding_dim,), minval=-limit, maxval=limit, dtype=jnp.float32
    )

    # One-time parameter re-layout (transpose only), done at init time.
    w_kernel, b_kernel = prepare_numeric_embedding_params(weight, bias)

    # Multi-tile, exact-fit batch.
    out = jax.block_until_ready(numeric_embedding(x, w_kernel, b_kernel))
    ref = x @ weight.T + bias
    assert out.shape == (batch, embedding_dim)
    assert jnp.allclose(out, ref, atol=1e-5, rtol=1e-5)

    # Multi-tile batch with a partial final tile (batch not a multiple of the tile).
    x_rag = jax.random.normal(jax.random.PRNGKey(2), (1000, input_dim), dtype=jnp.float32)
    out_rag = jax.block_until_ready(numeric_embedding(x_rag, w_kernel, b_kernel))
    ref_rag = x_rag @ weight.T + bias
    assert out_rag.shape == (1000, embedding_dim)
    assert jnp.allclose(out_rag, ref_rag, atol=1e-5, rtol=1e-5)

    # Tiny single-tile path (block == full array).
    x_small = jax.random.normal(jax.random.PRNGKey(1), (8, input_dim), dtype=jnp.float32)
    out_small = jax.block_until_ready(numeric_embedding(x_small, w_kernel, b_kernel))
    ref_small = x_small @ weight.T + bias
    assert out_small.shape == (8, embedding_dim)
    assert jnp.allclose(out_small, ref_small, atol=1e-5, rtol=1e-5)

    print("KERNEL_OK")
</pallas_src>

<mosaic_0001>
module attributes {stable_mosaic.version = 11 : i64} {
  func.func @_numeric_embedding_kernel(%arg0: i32, %arg1: memref<256x4xf32, #tpu.memory_space<vmem>>, %arg2: memref<4x32xf32, #tpu.memory_space<vmem>>, %arg3: memref<1x32xf32, #tpu.memory_space<vmem>>, %arg4: memref<256x32xf32, #tpu.memory_space<vmem>>) attributes {dimension_semantics = [#tpu.dimension_semantics<parallel>], iteration_bounds = array<i64: 4>, scalar_prefetch = 0 : i64, scratch_operands = 0 : i64, tpu.core_type = #tpu.core_type<tc>, window_params = [{transform_indices = @transform_0, window_bounds = array<i64: 256, 4>}, {pipeline_mode = #tpu.pipeline_mode<synchronous>, transform_indices = @transform_1, window_bounds = array<i64: 4, 32>}, {pipeline_mode = #tpu.pipeline_mode<synchronous>, transform_indices = @transform_2, window_bounds = array<i64: 1, 32>}, {transform_indices = @transform_3, window_bounds = array<i64: 256, 32>}]} {
    %c0 = arith.constant 0 : index
    %c0_0 = arith.constant 0 : index
    %0 = vector.load %arg1[%c0, %c0_0] : memref<256x4xf32, #tpu.memory_space<vmem>>, vector<256x4xf32>
    %c0_1 = arith.constant 0 : index
    %c0_2 = arith.constant 0 : index
    %1 = vector.load %arg3[%c0_1, %c0_2] : memref<1x32xf32, #tpu.memory_space<vmem>>, vector<1x32xf32>
    %2 = vector.shape_cast %1 : vector<1x32xf32> to vector<1x32xf32>
    %3 = vector.broadcast %2 : vector<1x32xf32> to vector<256x32xf32>
    %4 = vector.extract_strided_slice %0 {offsets = [0, 0], sizes = [256, 1], strides = [1, 1]} : vector<256x4xf32> to vector<256x1xf32>
    %c0_3 = arith.constant 0 : index
    %c0_4 = arith.constant 0 : index
    %5 = vector.load %arg2[%c0_3, %c0_4] : memref<4x32xf32, #tpu.memory_space<vmem>>, vector<1x32xf32>
    %6 = vector.broadcast %4 : vector<256x1xf32> to vector<256x32xf32>
    %7 = vector.broadcast %5 : vector<1x32xf32> to vector<256x32xf32>
    %8 = arith.mulf %6, %7 : vector<256x32xf32>
    %9 = arith.addf %3, %8 : vector<256x32xf32>
    %10 = vector.extract_strided_slice %0 {offsets = [0, 1], sizes = [256, 1], strides = [1, 1]} : vector<256x4xf32> to vector<256x1xf32>
    %c1 = arith.constant 1 : index
    %c0_5 = arith.constant 0 : index
    %11 = vector.load %arg2[%c1, %c0_5] : memref<4x32xf32, #tpu.memory_space<vmem>>, vector<1x32xf32>
    %12 = vector.broadcast %10 : vector<256x1xf32> to vector<256x32xf32>
    %13 = vector.broadcast %11 : vector<1x32xf32> to vector<256x32xf32>
    %14 = arith.mulf %12, %13 : vector<256x32xf32>
    %15 = arith.addf %9, %14 : vector<256x32xf32>
    %16 = vector.extract_strided_slice %0 {offsets = [0, 2], sizes = [256, 1], strides = [1, 1]} : vector<256x4xf32> to vector<256x1xf32>
    %c2 = arith.constant 2 : index
    %c0_6 = arith.constant 0 : index
    %17 = vector.load %arg2[%c2, %c0_6] : memref<4x32xf32, #tpu.memory_space<vmem>>, vector<1x32xf32>
    %18 = vector.broadcast %16 : vector<256x1xf32> to vector<256x32xf32>
    %19 = vector.broadcast %17 : vector<1x32xf32> to vector<256x32xf32>
    %20 = arith.mulf %18, %19 : vector<256x32xf32>
    %21 = arith.addf %15, %20 : vector<256x32xf32>
    %22 = vector.extract_strided_slice %0 {offsets = [0, 3], sizes = [256, 1], strides = [1, 1]} : vector<256x4xf32> to vector<256x1xf32>
    %c3 = arith.constant 3 : index
    %c0_7 = arith.constant 0 : index
    %23 = vector.load %arg2[%c3, %c0_7] : memref<4x32xf32, #tpu.memory_space<vmem>>, vector<1x32xf32>
    %24 = vector.broadcast %22 : vector<256x1xf32> to vector<256x32xf32>
    %25 = vector.broadcast %23 : vector<1x32xf32> to vector<256x32xf32>
    %26 = arith.mulf %24, %25 : vector<256x32xf32>
    %27 = arith.addf %21, %26 : vector<256x32xf32>
    %c0_8 = arith.constant 0 : index
    %c0_9 = arith.constant 0 : index
    %28 = vector.load %arg4[%c0_8, %c0_9] : memref<256x32xf32, #tpu.memory_space<vmem>>, vector<256x32xf32>
    tpu.vector_store %arg4[%c0_8, %c0_9], %27 {strides = array<i32>} : memref<256x32xf32, #tpu.memory_space<vmem>>, vector<256x32xf32>,
    return
  }
  func.func @transform_0(%arg0: i32) -> (i32, i32) {
    %c0_i32 = arith.constant 0 : i32
    %c0_i32_0 = arith.constant 0 : i32
    return %arg0, %c0_i32 : i32, i32
  }
  func.func @transform_1(%arg0: i32) -> (i32, i32) {
    %c0_i32 = arith.constant 0 : i32
    %c0_i32_0 = arith.constant 0 : i32
    %c0_i32_1 = arith.constant 0 : i32
    return %c0_i32, %c0_i32_0 : i32, i32
  }
  func.func @transform_2(%arg0: i32) -> (i32, i32) {
    %c0_i32 = arith.constant 0 : i32
    %c0_i32_0 = arith.constant 0 : i32
    %c0_i32_1 = arith.constant 0 : i32
    return %c0_i32, %c0_i32_0 : i32, i32
  }
  func.func @transform_3(%arg0: i32) -> (i32, i32) {
    %c0_i32 = arith.constant 0 : i32
    %c0_i32_0 = arith.constant 0 : i32
    return %arg0, %c0_i32 : i32, i32
  }
}

</mosaic_0001>

<llo_original>
// kernel: tpu_custom_call.1
$region0: #{tpu_custom_call.1}
  #allocation0 [shape = 'u32[]', space=smem, size = 0x4, offset = 0x4, fixed_abs, tag = 'smem constant byte address 0x4 - core index']
  #allocation1 [shape = 'u32[144,128]{1,0:T(1,128)}', space=vmem, size = 0x12000, scoped, tag = 'internal scratch']
  %s0 = inlined_call_operand.vmem [shape: f32[1024,4], index: 0, kind: input, shape index: {}]
  %s1 = inlined_call_operand.vmem [shape: f32[4,32], index: 1, kind: input, shape index: {}]
  %s2 = inlined_call_operand.vmem [shape: f32[1,32], index: 2, kind: input, shape index: {}]
  %s3 = inlined_call_operand.vmem [shape: f32[1024,32], index: 3, kind: output, shape index: {}]
  %s4 = sld [smem:[#allocation0]]
  $region45: #{tpu_custom_call.1} parent=0
    _
  %s6 = ssub.s32 1, %s4
  %s7 = scalar_select 0, %s6, %s4
  loop: start=0, step=1, limit=6
  $region2: #{tpu_custom_call.1} parent=0 // loop_pre_header
    _
  $region3: #{tpu_custom_call.1} parent=0 // loop_header
    %s9 = sphi 0, %s13
    %p10 = scmp.ge.s32.totalorder %s9, 6
    %s19 = sphi 0, %s21
    %s22 = sphi 0, %s19
    %s23 = sphi 0, %s22
    %s39 = sphi 0, %s23
    %s43 = sphi 0, %s43
    %s45 = sphi 0, %s43
    %s46 = sphi 0, %s45
    %s60 = sphi 0, %s46
    %s64 = sphi 0, %s64
    %s66 = sphi 0, %s64
    %s67 = sphi 0, %s66
    %s81 = sphi 0, %s67
    %s87 = sphi 0, %s89
    %s90 = sphi 0, %s87
    %s91 = sphi 0, %s90
    %s107 = sphi 0, %s91
  $region4: #{tpu_custom_call.1} parent=0 // loop_header_branch
    %12 = sbr.rel (%p10) target = $region8
  $region5: #{tpu_custom_call.1} parent=0 // loop_body
    %s14 = ssub.s32 %s9, 1
    %s15 = ssub.s32 %s9, 2
    %s16 = sadd.s32 %s9, 1
    %s17 = ssub.s32 %s9, %s16
    %p18 = scmp.eq.s32.totalorder %s17, 0
    %s20 = sadd.s32 %s19, 1
    %s21 = scalar_select %p18, %s19, %s20
    %p24 = pneg %p18
    %p25 = scmp.eq.s32.totalorder %s9, 3
    %p26 = por %p24, %p25
    %p27 = scmp.ne.s32.totalorder %s19, %s22
    %p28 = scmp.eq.s32.totalorder %s9, 0
    %p29 = por %p27, %p28
    %p30 = scmp.ne.s32.totalorder %s19, %s22
    %p31 = scmp.eq.s32.totalorder %s14, 3
    %p32 = por %p30, %p31
    %p33 = scmp.ne.s32.totalorder %s22, %s23
    %p34 = scmp.eq.s32.totalorder %s14, 0
    %p35 = por %p33, %p34
    %p36 = scmp.ne.s32.totalorder %s22, %s23
    %p37 = scmp.eq.s32.totalorder %s15, 3
    %p38 = por %p36, %p37
    %p40 = scmp.ne.s32.totalorder %s23, %s39
    %p41 = scmp.eq.s32.totalorder %s15, 0
    %p42 = por %p40, %p41
    %s44 = sadd.s32 %s43, 1
    %p47 = scmp.eq.s32.totalorder %s9, 3
    %p48 = scmp.ne.s32.totalorder %s43, %s45
    %p49 = scmp.eq.s32.totalorder %s9, 0
    %p50 = por %p48, %p49
    %p51 = scmp.ne.s32.totalorder %s43, %s45
    %p52 = scmp.eq.s32.totalorder %s14, 3
    %p53 = por %p51, %p52
    %p54 = scmp.ne.s32.totalorder %s45, %s46
    %p55 = scmp.eq.s32.totalorder %s14, 0
    %p56 = por %p54, %p55
    %p57 = scmp.ne.s32.totalorder %s45, %s46
    %p58 = scmp.eq.s32.totalorder %s15, 3
    %p59 = por %p57, %p58
    %p61 = scmp.ne.s32.totalorder %s46, %s60
    %p62 = scmp.eq.s32.totalorder %s15, 0
    %p63 = por %p61, %p62
    %s65 = sadd.s32 %s64, 1
    %p68 = scmp.eq.s32.totalorder %s9, 3
    %p69 = scmp.ne.s32.totalorder %s64, %s66
    %p70 = scmp.eq.s32.totalorder %s9, 0
    %p71 = por %p69, %p70
    %p72 = scmp.ne.s32.totalorder %s64, %s66
    %p73 = scmp.eq.s32.totalorder %s14, 3
    %p74 = por %p72, %p73
    %p75 = scmp.ne.s32.totalorder %s66, %s67
    %p76 = scmp.eq.s32.totalorder %s14, 0
    %p77 = por %p75, %p76
    %p78 = scmp.ne.s32.totalorder %s66, %s67
    %p79 = scmp.eq.s32.totalorder %s15, 3
    %p80 = por %p78, %p79
    %p82 = scmp.ne.s32.totalorder %s67, %s81
    %p83 = scmp.eq.s32.totalorder %s15, 0
    %p84 = por %p82, %p83
    %s85 = ssub.s32 %s9, %s16
    %p86 = scmp.eq.s32.totalorder %s85, 0
    %s88 = sadd.s32 %s87, 1
    %s89 = scalar_select %p86, %s87, %s88
    %p92 = pneg %p86
    %p93 = scmp.eq.s32.totalorder %s9, 3
    %p94 = por %p92, %p93
    %p95 = scmp.ne.s32.totalorder %s87, %s90
    %p96 = scmp.eq.s32.totalorder %s9, 0
    %p97 = por %p95, %p96
    %p98 = scmp.ne.s32.totalorder %s87, %s90
    %p99 = scmp.eq.s32.totalorder %s14, 3
    %p100 = por %p98, %p99
    %p101 = scmp.ne.s32.totalorder %s90, %s91
    %p102 = scmp.eq.s32.totalorder %s14, 0
    %p103 = por %p101, %p102
    %p104 = scmp.ne.s32.totalorder %s90, %s91
    %p105 = scmp.eq.s32.totalorder %s15, 3
    %p106 = por %p104, %p105
    %p108 = scmp.ne.s32.totalorder %s91, %s107
    %p109 = scmp.eq.s32.totalorder %s15, 0
    %p110 = por %p108, %p109
    %p111 = scmp.le.s32.totalorder 1, %s9
    %p112 = scmp.lt.s32.totalorder %s9, 5
    %p113 = pnand %p111, %p112
    %p114 = pneg %p113
    // Predicated region
    $region9: #{tpu_custom_call.1} parent=5 // pred_check
      _
    $region10: #{tpu_custom_call.1} parent=5 // pred_check_branch
      %116 = sbr.rel (%p113) target = $region12
    $region11: #{tpu_custom_call.1} parent=5 // pred_region
      %s117 = ssub.s32 %s9, 1
      // Predicated region
      $region13: #{tpu_custom_call.1} parent=11 // pred_check
        %p118 = pneg %p56
      $region14: #{tpu_custom_call.1} parent=11 // pred_check_branch
        %120 = sbr.rel (%p118) target = $region16
      $region15: #{tpu_custom_call.1} parent=11 // pred_region
        _
      $region16: #{tpu_custom_call.1} parent=11 // pred_fallthru
        _
      // Predicated region
      $region17: #{tpu_custom_call.1} parent=11 // pred_check
        %p121 = pneg %p77
      $region18: #{tpu_custom_call.1} parent=11 // pred_check_branch
        %123 = sbr.rel (%p121) target = $region20
      $region19: #{tpu_custom_call.1} parent=11 // pred_region
        _
      $region20: #{tpu_custom_call.1} parent=11 // pred_fallthru
        _
    $region12: #{tpu_custom_call.1} parent=5 // pred_fallthru
      _
    %p124 = scmp.lt.s32.totalorder %s9, 4
    // Predicated region
    $region21: #{tpu_custom_call.1} parent=5 // pred_check
      %p125 = pneg %p124
    $region22: #{tpu_custom_call.1} parent=5 // pred_check_branch
      %127 = sbr.rel (%p125) target = $region24
    $region23: #{tpu_custom_call.1} parent=5 // pred_region
      // Predicated region
      $region25: #{tpu_custom_call.1} parent=23 // pred_check
        %p128 = pneg %p29
      $region26: #{tpu_custom_call.1} parent=23 // pred_check_branch
        %130 = sbr.rel (%p128) target = $region28
      $region27: #{tpu_custom_call.1} parent=23 // pred_region
        %s131 = smul.u32 32, %s9
        %p132 = scmp.lt.s32.totalorder %s131, 127
        %s133 = scalar_select %p132, %s131, 127
        %s134 = smul.addr %s133, 8
        %s135 = scalar_lea.vmem %s0, %s134
        %s136 = smul.u32 32, %s9
      $region28: #{tpu_custom_call.1} parent=23 // pred_fallthru
        _
    $region24: #{tpu_custom_call.1} parent=5 // pred_fallthru
      _
    %p137 = scmp.le.s32.totalorder 1, %s9
    %p138 = scmp.lt.s32.totalorder %s9, 5
    %p139 = pnand %p137, %p138
    %p140 = pneg %p139
    // Predicated region
    $region29: #{tpu_custom_call.1} parent=5 // pred_check
      _
    $region30: #{tpu_custom_call.1} parent=5 // pred_check_branch
      %142 = sbr.rel (%p139) target = $region32
    $region31: #{tpu_custom_call.1} parent=5 // pred_region
      %s143 = ssub.s32 %s9, 1
      %s144 = smul.u32 32, %s14
      %p145 = scmp.lt.s32.totalorder %s144, 127
      %s146 = scalar_select %p145, %s144, 127
      %s147 = smul.addr %s146, 8
      %s148 = scalar_lea.vmem %s0, %s147
      %p149 = pneg %p35
      %p150 = pneg %p32
      %p151 = pneg %p56
      %p152 = pneg %p53
      %p153 = pneg %p77
      %p154 = pneg %p74
      %p155 = pneg %p103
      %p156 = pneg %p100
      %s157 = smul.u32 32, %s14
      %p158 = scmp.lt.s32.totalorder %s157, 127
      %s159 = scalar_select %p158, %s157, 127
      %s160 = smul.addr %s159, 8
      %s161 = scalar_lea.vmem %s3, %s160
      %s162 = smul.u32 32, %s14
      %p163 = scmp.lt.s32.totalorder %s162, 127
      %s164 = scalar_select %p163, %s162, 127
      %s165 = smul.addr %s164, 8
      %s166 = scalar_lea.vmem %s0, %s165
      %s167 = smul.u32 32, %s14
      %s168 = smul.u32 32, %s14
      %p169 = scmp.lt.s32.totalorder %s168, 127
      %s170 = scalar_select %p169, %s168, 127
      %s171 = smul.addr %s170, 8
      %s172 = scalar_lea.vmem %s3, %s171
      %s173 = smul.u32 32, %s14
      %v174 = vld [vmem:[%s166] sm:$0xff]
      %v175 = vld [vmem:[%s166 + $0x8] sm:$0xff]
      %v176 = vld [vmem:[%s166 + $0x10] sm:$0xff]
      %v177 = vld [vmem:[%s166 + $0x18] sm:$0xff]
      %v178 = vld [vmem:[%s166 + $0x20] sm:$0xff]
      %v179 = vld [vmem:[%s166 + $0x28] sm:$0xff]
      %v180 = vld [vmem:[%s166 + $0x30] sm:$0xff]
      %v181 = vld [vmem:[%s166 + $0x38] sm:$0xff]
      %v182 = vld [vmem:[%s166 + $0x40] sm:$0xff]
      %v183 = vld [vmem:[%s166 + $0x48] sm:$0xff]
      %v184 = vld [vmem:[%s166 + $0x50] sm:$0xff]
      %v185 = vld [vmem:[%s166 + $0x58] sm:$0xff]
      %v186 = vld [vmem:[%s166 + $0x60] sm:$0xff]
      %v187 = vld [vmem:[%s166 + $0x68] sm:$0xff]
      %v188 = vld [vmem:[%s166 + $0x70] sm:$0xff]
      %v189 = vld [vmem:[%s166 + $0x78] sm:$0xff]
      %v190 = vld [vmem:[%s166 + $0x80] sm:$0xff]
      %v191 = vld [vmem:[%s166 + $0x88] sm:$0xff]
      %v192 = vld [vmem:[%s166 + $0x90] sm:$0xff]
      %v193 = vld [vmem:[%s166 + $0x98] sm:$0xff]
      %v194 = vld [vmem:[%s166 + $0xa0] sm:$0xff]
      %v195 = vld [vmem:[%s166 + $0xa8] sm:$0xff]
      %v196 = vld [vmem:[%s166 + $0xb0] sm:$0xff]
      %v197 = vld [vmem:[%s166 + $0xb8] sm:$0xff]
      %v198 = vld [vmem:[%s166 + $0xc0] sm:$0xff]
      %v199 = vld [vmem:[%s166 + $0xc8] sm:$0xff]
      %v200 = vld [vmem:[%s166 + $0xd0] sm:$0xff]
      %v201 = vld [vmem:[%s166 + $0xd8] sm:$0xff]
      %v202 = vld [vmem:[%s166 + $0xe0] sm:$0xff]
      %v203 = vld [vmem:[%s166 + $0xe8] sm:$0xff]
      %v204 = vld [vmem:[%s166 + $0xf0] sm:$0xff]
      %v205 = vld [vmem:[%s166 + $0xf8] sm:$0xff]
      %v206 = vld [vmem:[%s2] sm:$0x1]
      %v208 = vlaneseq
      %v209 = vshrl.u32 %v208, 7
      %v210 = vsub.s32 0, %v209
      %v211 = vrot.slane %v206, %v210
      %v213 = vld [vmem:[%s1] sm:$0x1]
      %215 = vset.pattern.permute.xlu0 0
      %216 = vperm.xlu0 %215, %v174
      %v217 = vpop.permute.xlu0 %216
      %220 = vset.pattern.permute.xlu0 0
      %221 = vperm.xlu0 %220, %v175
      %v222 = vpop.permute.xlu0 %221
      %225 = vset.pattern.permute.xlu0 0
      %226 = vperm.xlu0 %225, %v176
      %v227 = vpop.permute.xlu0 %226
      %230 = vset.pattern.permute.xlu0 0
      %231 = vperm.xlu0 %230, %v177
      %v232 = vpop.permute.xlu0 %231
      %235 = vset.pattern.permute.xlu0 0
      %236 = vperm.xlu0 %235, %v178
      %v237 = vpop.permute.xlu0 %236
      %240 = vset.pattern.permute.xlu0 0
      %241 = vperm.xlu0 %240, %v179
      %v242 = vpop.permute.xlu0 %241
      %245 = vset.pattern.permute.xlu0 0
      %246 = vperm.xlu0 %245, %v180
      %v247 = vpop.permute.xlu0 %246
      %250 = vset.pattern.permute.xlu0 0
      %251 = vperm.xlu0 %250, %v181
      %v252 = vpop.permute.xlu0 %251
      %255 = vset.pattern.permute.xlu0 0
      %256 = vperm.xlu0 %255, %v182
      %v257 = vpop.permute.xlu0 %256
      %260 = vset.pattern.permute.xlu0 0
      %261 = vperm.xlu0 %260, %v183
      %v262 = vpop.permute.xlu0 %261
      %265 = vset.pattern.permute.xlu0 0
      %266 = vperm.xlu0 %265, %v184
      %v267 = vpop.permute.xlu0 %266
      %270 = vset.pattern.permute.xlu0 0
      %271 = vperm.xlu0 %270, %v185
      %v272 = vpop.permute.xlu0 %271
      %275 = vset.pattern.permute.xlu0 0
      %276 = vperm.xlu0 %275, %v186
      %v277 = vpop.permute.xlu0 %276
      %280 = vset.pattern.permute.xlu0 0
      %281 = vperm.xlu0 %280, %v187
      %v282 = vpop.permute.xlu0 %281
      %285 = vset.pattern.permute.xlu0 0
      %286 = vperm.xlu0 %285, %v188
      %v287 = vpop.permute.xlu0 %286
      %290 = vset.pattern.permute.xlu0 0
      %291 = vperm.xlu0 %290, %v189
      %v292 = vpop.permute.xlu0 %291
      %295 = vset.pattern.permute.xlu0 0
      %296 = vperm.xlu0 %295, %v190
      %v297 = vpop.permute.xlu0 %296
      %300 = vset.pattern.permute.xlu0 0
      %301 = vperm.xlu0 %300, %v191
      %v302 = vpop.permute.xlu0 %301
      %305 = vset.pattern.permute.xlu0 0
      %306 = vperm.xlu0 %305, %v192
      %v307 = vpop.permute.xlu0 %306
      %310 = vset.pattern.permute.xlu0 0
      %311 = vperm.xlu0 %310, %v193
      %v312 = vpop.permute.xlu0 %311
      %315 = vset.pattern.permute.xlu0 0
      %316 = vperm.xlu0 %315, %v194
      %v317 = vpop.permute.xlu0 %316
      %320 = vset.pattern.permute.xlu0 0
      %321 = vperm.xlu0 %320, %v195
      %v322 = vpop.permute.xlu0 %321
      %325 = vset.pattern.permute.xlu0 0
      %326 = vperm.xlu0 %325, %v196
      %v327 = vpop.permute.xlu0 %326
      %330 = vset.pattern.permute.xlu0 0
      %331 = vperm.xlu0 %330, %v197
      %v332 = vpop.permute.xlu0 %331
      %335 = vset.pattern.permute.xlu0 0
      %336 = vperm.xlu0 %335, %v198
      %v337 = vpop.permute.xlu0 %336
      %340 = vset.pattern.permute.xlu0 0
      %341 = vperm.xlu0 %340, %v199
      %v342 = vpop.permute.xlu0 %341
      %345 = vset.pattern.permute.xlu0 0
      %346 = vperm.xlu0 %345, %v200
      %v347 = vpop.permute.xlu0 %346
      %350 = vset.pattern.permute.xlu0 0
      %351 = vperm.xlu0 %350, %v201
      %v352 = vpop.permute.xlu0 %351
      %355 = vset.pattern.permute.xlu0 0
      %356 = vperm.xlu0 %355, %v202
      %v357 = vpop.permute.xlu0 %356
      %360 = vset.pattern.permute.xlu0 0
      %361 = vperm.xlu0 %360, %v203
      %v362 = vpop.permute.xlu0 %361
      %365 = vset.pattern.permute.xlu0 0
      %366 = vperm.xlu0 %365, %v204
      %v367 = vpop.permute.xlu0 %366
      %370 = vset.pattern.permute.xlu0 0
      %371 = vperm.xlu0 %370, %v205
      %v372 = vpop.permute.xlu0 %371
      %v374 = vlaneseq
      %v375 = vshrl.u32 %v374, 7
      %v376 = vsub.s32 0, %v375
      %v377 = vrot.slane %v213, %v376
      %v378 = vmul.f32 %v217, %v377
      %v379 = vmul.f32 %v222, %v377
      %v380 = vmul.f32 %v227, %v377
      %v381 = vmul.f32 %v232, %v377
      %v382 = vmul.f32 %v237, %v377
      %v383 = vmul.f32 %v242, %v377
      %v384 = vmul.f32 %v247, %v377
      %v385 = vmul.f32 %v252, %v377
      %v386 = vmul.f32 %v257, %v377
      %v387 = vmul.f32 %v262, %v377
      %v388 = vmul.f32 %v267, %v377
      %v389 = vmul.f32 %v272, %v377
      %v390 = vmul.f32 %v277, %v377
      %v391 = vmul.f32 %v282, %v377
      %v392 = vmul.f32 %v287, %v377
      %v393 = vmul.f32 %v292, %v377
      %v394 = vmul.f32 %v297, %v377
      %v395 = vmul.f32 %v302, %v377
      %v396 = vmul.f32 %v307, %v377
      %v397 = vmul.f32 %v312, %v377
      %v398 = vmul.f32 %v317, %v377
      %v399 = vmul.f32 %v322, %v377
      %v400 = vmul.f32 %v327, %v377
      %v401 = vmul.f32 %v332, %v377
      %v402 = vmul.f32 %v337, %v377
      %v403 = vmul.f32 %v342, %v377
      %v404 = vmul.f32 %v347, %v377
      %v405 = vmul.f32 %v352, %v377
      %v406 = vmul.f32 %v357, %v377
      %v407 = vmul.f32 %v362, %v377
      %v408 = vmul.f32 %v367, %v377
      %v409 = vmul.f32 %v372, %v377
      %v410 = vadd.f32 %v211, %v378
      %v411 = vadd.f32 %v211, %v379
      %v412 = vadd.f32 %v211, %v380
      %v413 = vadd.f32 %v211, %v381
      %v414 = vadd.f32 %v211, %v382
      %v415 = vadd.f32 %v211, %v383
      %v416 = vadd.f32 %v211, %v384
      %v417 = vadd.f32 %v211, %v385
      %v418 = vadd.f32 %v211, %v386
      %v419 = vadd.f32 %v211, %v387
      %v420 = vadd.f32 %v211, %v388
      %v421 = vadd.f32 %v211, %v389
      %v422 = vadd.f32 %v211, %v390
      %v423 = vadd.f32 %v211, %v391
      %v424 = vadd.f32 %v211, %v392
      %v425 = vadd.f32 %v211, %v393
      %v426 = vadd.f32 %v211, %v394
      %v427 = vadd.f32 %v211, %v395
      %v428 = vadd.f32 %v211, %v396
      %v429 = vadd.f32 %v211, %v397
      %v430 = vadd.f32 %v211, %v398
      %v431 = vadd.f32 %v211, %v399
      %v432 = vadd.f32 %v211, %v400
      %v433 = vadd.f32 %v211, %v401
      %v434 = vadd.f32 %v211, %v402
      %v435 = vadd.f32 %v211, %v403
      %v436 = vadd.f32 %v211, %v404
      %v437 = vadd.f32 %v211, %v405
      %v438 = vadd.f32 %v211, %v406
      %v439 = vadd.f32 %v211, %v407
      %v440 = vadd.f32 %v211, %v408
      %v441 = vadd.f32 %v211, %v409
      %v442 = vld [vmem:[%s1 + $0x1] sm:$0x1]
      %443 = vset.pattern.permute.xlu0 1
      %444 = vperm.xlu0 %443, %v174
      %v445 = vpop.permute.xlu0 %444
      %447 = vset.pattern.permute.xlu0 1
      %448 = vperm.xlu0 %447, %v175
      %v449 = vpop.permute.xlu0 %448
      %451 = vset.pattern.permute.xlu0 1
      %452 = vperm.xlu0 %451, %v176
      %v453 = vpop.permute.xlu0 %452
      %455 = vset.pattern.permute.xlu0 1
      %456 = vperm.xlu0 %455, %v177
      %v457 = vpop.permute.xlu0 %456
      %459 = vset.pattern.permute.xlu0 1
      %460 = vperm.xlu0 %459, %v178
      %v461 = vpop.permute.xlu0 %460
      %463 = vset.pattern.permute.xlu0 1
      %464 = vperm.xlu0 %463, %v179
      %v465 = vpop.permute.xlu0 %464
      %467 = vset.pattern.permute.xlu0 1
      %468 = vperm.xlu0 %467, %v180
      %v469 = vpop.permute.xlu0 %468
      %471 = vset.pattern.permute.xlu0 1
      %472 = vperm.xlu0 %471, %v181
      %v473 = vpop.permute.xlu0 %472
      %475 = vset.pattern.permute.xlu0 1
      %476 = vperm.xlu0 %475, %v182
      %v477 = vpop.permute.xlu0 %476
      %479 = vset.pattern.permute.xlu0 1
      %480 = vperm.xlu0 %479, %v183
      %v481 = vpop.permute.xlu0 %480
      %483 = vset.pattern.permute.xlu0 1
      %484 = vperm.xlu0 %483, %v184
      %v485 = vpop.permute.xlu0 %484
      %487 = vset.pattern.permute.xlu0 1
      %488 = vperm.xlu0 %487, %v185
      %v489 = vpop.permute.xlu0 %488
      %491 = vset.pattern.permute.xlu0 1
      %492 = vperm.xlu0 %491, %v186
      %v493 = vpop.permute.xlu0 %492
      %495 = vset.pattern.permute.xlu0 1
      %496 = vperm.xlu0 %495, %v187
      %v497 = vpop.permute.xlu0 %496
      %499 = vset.pattern.permute.xlu0 1
      %500 = vperm.xlu0 %499, %v188
      %v501 = vpop.permute.xlu0 %500
      %503 = vset.pattern.permute.xlu0 1
      %504 = vperm.xlu0 %503, %v189
      %v505 = vpop.permute.xlu0 %504
      %507 = vset.pattern.permute.xlu0 1
      %508 = vperm.xlu0 %507, %v190
      %v509 = vpop.permute.xlu0 %508
      %511 = vset.pattern.permute.xlu0 1
      %512 = vperm.xlu0 %511, %v191
      %v513 = vpop.permute.xlu0 %512
      %515 = vset.pattern.permute.xlu0 1
      %516 = vperm.xlu0 %515, %v192
      %v517 = vpop.permute.xlu0 %516
      %519 = vset.pattern.permute.xlu0 1
      %520 = vperm.xlu0 %519, %v193
      %v521 = vpop.permute.xlu0 %520
      %523 = vset.pattern.permute.xlu0 1
      %524 = vperm.xlu0 %523, %v194
      %v525 = vpop.permute.xlu0 %524
      %527 = vset.pattern.permute.xlu0 1
      %528 = vperm.xlu0 %527, %v195
      %v529 = vpop.permute.xlu0 %528
      %531 = vset.pattern.permute.xlu0 1
      %532 = vperm.xlu0 %531, %v196
      %v533 = vpop.permute.xlu0 %532
      %535 = vset.pattern.permute.xlu0 1
      %536 = vperm.xlu0 %535, %v197
      %v537 = vpop.permute.xlu0 %536
      %539 = vset.pattern.permute.xlu0 1
      %540 = vperm.xlu0 %539, %v198
      %v541 = vpop.permute.xlu0 %540
      %543 = vset.pattern.permute.xlu0 1
      %544 = vperm.xlu0 %543, %v199
      %v545 = vpop.permute.xlu0 %544
      %547 = vset.pattern.permute.xlu0 1
      %548 = vperm.xlu0 %547, %v200
      %v549 = vpop.permute.xlu0 %548
      %551 = vset.pattern.permute.xlu0 1
      %552 = vperm.xlu0 %551, %v201
      %v553 = vpop.permute.xlu0 %552
      %555 = vset.pattern.permute.xlu0 1
      %556 = vperm.xlu0 %555, %v202
      %v557 = vpop.permute.xlu0 %556
      %559 = vset.pattern.permute.xlu0 1
      %560 = vperm.xlu0 %559, %v203
      %v561 = vpop.permute.xlu0 %560
      %563 = vset.pattern.permute.xlu0 1
      %564 = vperm.xlu0 %563, %v204
      %v565 = vpop.permute.xlu0 %564
      %567 = vset.pattern.permute.xlu0 1
      %568 = vperm.xlu0 %567, %v205
      %v569 = vpop.permute.xlu0 %568
      %v571 = vlaneseq
      %v572 = vshrl.u32 %v571, 7
      %v573 = vsub.s32 0, %v572
      %v574 = vrot.slane %v442, %v573
      %v575 = vmul.f32 %v445, %v574
      %v576 = vmul.f32 %v449, %v574
      %v577 = vmul.f32 %v453, %v574
      %v578 = vmul.f32 %v457, %v574
      %v579 = vmul.f32 %v461, %v574
      %v580 = vmul.f32 %v465, %v574
      %v581 = vmul.f32 %v469, %v574
      %v582 = vmul.f32 %v473, %v574
      %v583 = vmul.f32 %v477, %v574
      %v584 = vmul.f32 %v481, %v574
      %v585 = vmul.f32 %v485, %v574
      %v586 = vmul.f32 %v489, %v574
      %v587 = vmul.f32 %v493, %v574
      %v588 = vmul.f32 %v497, %v574
      %v589 = vmul.f32 %v501, %v574
      %v590 = vmul.f32 %v505, %v574
      %v591 = vmul.f32 %v509, %v574
      %v592 = vmul.f32 %v513, %v574
      %v593 = vmul.f32 %v517, %v574
      %v594 = vmul.f32 %v521, %v574
      %v595 = vmul.f32 %v525, %v574
      %v596 = vmul.f32 %v529, %v574
      %v597 = vmul.f32 %v533, %v574
      %v598 = vmul.f32 %v537, %v574
      %v599 = vmul.f32 %v541, %v574
      %v600 = vmul.f32 %v545, %v574
      %v601 = vmul.f32 %v549, %v574
      %v602 = vmul.f32 %v553, %v574
      %v603 = vmul.f32 %v557, %v574
      %v604 = vmul.f32 %v561, %v574
      %v605 = vmul.f32 %v565, %v574
      %v606 = vmul.f32 %v569, %v574
      %v607 = vadd.f32 %v410, %v575
      %v608 = vadd.f32 %v411, %v576
      %v609 = vadd.f32 %v412, %v577
      %v610 = vadd.f32 %v413, %v578
      %v611 = vadd.f32 %v414, %v579
      %v612 = vadd.f32 %v415, %v580
      %v613 = vadd.f32 %v416, %v581
      %v614 = vadd.f32 %v417, %v582
      %v615 = vadd.f32 %v418, %v583
      %v616 = vadd.f32 %v419, %v584
      %v617 = vadd.f32 %v420, %v585
      %v618 = vadd.f32 %v421, %v586
      %v619 = vadd.f32 %v422, %v587
      %v620 = vadd.f32 %v423, %v588
      %v621 = vadd.f32 %v424, %v589
      %v622 = vadd.f32 %v425, %v590
      %v623 = vadd.f32 %v426, %v591
      %v624 = vadd.f32 %v427, %v592
      %v625 = vadd.f32 %v428, %v593
      %v626 = vadd.f32 %v429, %v594
      %v627 = vadd.f32 %v430, %v595
      %v628 = vadd.f32 %v431, %v596
      %v629 = vadd.f32 %v432, %v597
      %v630 = vadd.f32 %v433, %v598
      %v631 = vadd.f32 %v434, %v599
      %v632 = vadd.f32 %v435, %v600
      %v633 = vadd.f32 %v436, %v601
      %v634 = vadd.f32 %v437, %v602
      %v635 = vadd.f32 %v438, %v603
      %v636 = vadd.f32 %v439, %v604
      %v637 = vadd.f32 %v440, %v605
      %v638 = vadd.f32 %v441, %v606
      %v639 = vld [vmem:[%s1 + $0x2] sm:$0x1]
      %640 = vset.pattern.permute.xlu0 2
      %641 = vperm.xlu0 %640, %v174
      %v642 = vpop.permute.xlu0 %641
      %644 = vset.pattern.permute.xlu0 2
      %645 = vperm.xlu0 %644, %v175
      %v646 = vpop.permute.xlu0 %645
      %648 = vset.pattern.permute.xlu0 2
      %649 = vperm.xlu0 %648, %v176
      %v650 = vpop.permute.xlu0 %649
      %652 = vset.pattern.permute.xlu0 2
      %653 = vperm.xlu0 %652, %v177
      %v654 = vpop.permute.xlu0 %653
      %656 = vset.pattern.permute.xlu0 2
      %657 = vperm.xlu0 %656, %v178
      %v658 = vpop.permute.xlu0 %657
      %660 = vset.pattern.permute.xlu0 2
      %661 = vperm.xlu0 %660, %v179
      %v662 = vpop.permute.xlu0 %661
      %664 = vset.pattern.permute.xlu0 2
      %665 = vperm.xlu0 %664, %v180
      %v666 = vpop.permute.xlu0 %665
      %668 = vset.pattern.permute.xlu0 2
      %669 = vperm.xlu0 %668, %v181
      %v670 = vpop.permute.xlu0 %669
      %672 = vset.pattern.permute.xlu0 2
      %673 = vperm.xlu0 %672, %v182
      %v674 = vpop.permute.xlu0 %673
      %676 = vset.pattern.permute.xlu0 2
      %677 = vperm.xlu0 %676, %v183
      %v678 = vpop.permute.xlu0 %677
      %680 = vset.pattern.permute.xlu0 2
      %681 = vperm.xlu0 %680, %v184
      %v682 = vpop.permute.xlu0 %681
      %684 = vset.pattern.permute.xlu0 2
      %685 = vperm.xlu0 %684, %v185
      %v686 = vpop.permute.xlu0 %685
      %688 = vset.pattern.permute.xlu0 2
      %689 = vperm.xlu0 %688, %v186
      %v690 = vpop.permute.xlu0 %689
      %692 = vset.pattern.permute.xlu0 2
      %693 = vperm.xlu0 %692, %v187
      %v694 = vpop.permute.xlu0 %693
      %696 = vset.pattern.permute.xlu0 2
      %697 = vperm.xlu0 %696, %v188
      %v698 = vpop.permute.xlu0 %697
      %700 = vset.pattern.permute.xlu0 2
      %701 = vperm.xlu0 %700, %v189
      %v702 = vpop.permute.xlu0 %701
      %704 = vset.pattern.permute.xlu0 2
      %705 = vperm.xlu0 %704, %v190
      %v706 = vpop.permute.xlu0 %705
      %708 = vset.pattern.permute.xlu0 2
      %709 = vperm.xlu0 %708, %v191
      %v710 = vpop.permute.xlu0 %709
      %712 = vset.pattern.permute.xlu0 2
      %713 = vperm.xlu0 %712, %v192
      %v714 = vpop.permute.xlu0 %713
      %716 = vset.pattern.permute.xlu0 2
      %717 = vperm.xlu0 %716, %v193
      %v718 = vpop.permute.xlu0 %717
      %720 = vset.pattern.permute.xlu0 2
      %721 = vperm.xlu0 %720, %v194
      %v722 = vpop.permute.xlu0 %721
      %724 = vset.pattern.permute.xlu0 2
      %725 = vperm.xlu0 %724, %v195
      %v726 = vpop.permute.xlu0 %725
      %728 = vset.pattern.permute.xlu0 2
      %729 = vperm.xlu0 %728, %v196
      %v730 = vpop.permute.xlu0 %729
      %732 = vset.pattern.permute.xlu0 2
      %733 = vperm.xlu0 %732, %v197
      %v734 = vpop.permute.xlu0 %733
      %736 = vset.pattern.permute.xlu0 2
      %737 = vperm.xlu0 %736, %v198
      %v738 = vpop.permute.xlu0 %737
      %740 = vset.pattern.permute.xlu0 2
      %741 = vperm.xlu0 %740, %v199
      %v742 = vpop.permute.xlu0 %741
      %744 = vset.pattern.permute.xlu0 2
      %745 = vperm.xlu0 %744, %v200
      %v746 = vpop.permute.xlu0 %745
      %748 = vset.pattern.permute.xlu0 2
      %749 = vperm.xlu0 %748, %v201
      %v750 = vpop.permute.xlu0 %749
      %752 = vset.pattern.permute.xlu0 2
      %753 = vperm.xlu0 %752, %v202
      %v754 = vpop.permute.xlu0 %753
      %756 = vset.pattern.permute.xlu0 2
      %757 = vperm.xlu0 %756, %v203
      %v758 = vpop.permute.xlu0 %757
      %760 = vset.pattern.permute.xlu0 2
      %761 = vperm.xlu0 %760, %v204
      %v762 = vpop.permute.xlu0 %761
      %764 = vset.pattern.permute.xlu0 2
      %765 = vperm.xlu0 %764, %v205
      %v766 = vpop.permute.xlu0 %765
      %v768 = vlaneseq
      %v769 = vshrl.u32 %v768, 7
      %v770 = vsub.s32 0, %v769
      %v771 = vrot.slane %v639, %v770
      %v772 = vmul.f32 %v642, %v771
      %v773 = vmul.f32 %v646, %v771
      %v774 = vmul.f32 %v650, %v771
      %v775 = vmul.f32 %v654, %v771
      %v776 = vmul.f32 %v658, %v771
      %v777 = vmul.f32 %v662, %v771
      %v778 = vmul.f32 %v666, %v771
      %v779 = vmul.f32 %v670, %v771
      %v780 = vmul.f32 %v674, %v771
      %v781 = vmul.f32 %v678, %v771
      %v782 = vmul.f32 %v682, %v771
      %v783 = vmul.f32 %v686, %v771
      %v784 = vmul.f32 %v690, %v771
      %v785 = vmul.f32 %v694, %v771
      %v786 = vmul.f32 %v698, %v771
      %v787 = vmul.f32 %v702, %v771
      %v788 = vmul.f32 %v706, %v771
      %v789 = vmul.f32 %v710, %v771
      %v790 = vmul.f32 %v714, %v771
      %v791 = vmul.f32 %v718, %v771
      %v792 = vmul.f32 %v722, %v771
      %v793 = vmul.f32 %v726, %v771
      %v794 = vmul.f32 %v730, %v771
      %v795 = vmul.f32 %v734, %v771
      %v796 = vmul.f32 %v738, %v771
      %v797 = vmul.f32 %v742, %v771
      %v798 = vmul.f32 %v746, %v771
      %v799 = vmul.f32 %v750, %v771
      %v800 = vmul.f32 %v754, %v771
      %v801 = vmul.f32 %v758, %v771
      %v802 = vmul.f32 %v762, %v771
      %v803 = vmul.f32 %v766, %v771
      %v804 = vadd.f32 %v607, %v772
      %v805 = vadd.f32 %v608, %v773
      %v806 = vadd.f32 %v609, %v774
      %v807 = vadd.f32 %v610, %v775
      %v808 = vadd.f32 %v611, %v776
      %v809 = vadd.f32 %v612, %v777
      %v810 = vadd.f32 %v613, %v778
      %v811 = vadd.f32 %v614, %v779
      %v812 = vadd.f32 %v615, %v780
      %v813 = vadd.f32 %v616, %v781
      %v814 = vadd.f32 %v617, %v782
      %v815 = vadd.f32 %v618, %v783
      %v816 = vadd.f32 %v619, %v784
      %v817 = vadd.f32 %v620, %v785
      %v818 = vadd.f32 %v621, %v786
      %v819 = vadd.f32 %v622, %v787
      %v820 = vadd.f32 %v623, %v788
      %v821 = vadd.f32 %v624, %v789
      %v822 = vadd.f32 %v625, %v790
      %v823 = vadd.f32 %v626, %v791
      %v824 = vadd.f32 %v627, %v792
      %v825 = vadd.f32 %v628, %v793
      %v826 = vadd.f32 %v629, %v794
      %v827 = vadd.f32 %v630, %v795
      %v828 = vadd.f32 %v631, %v796
      %v829 = vadd.f32 %v632, %v797
      %v830 = vadd.f32 %v633, %v798
      %v831 = vadd.f32 %v634, %v799
      %v832 = vadd.f32 %v635, %v800
      %v833 = vadd.f32 %v636, %v801
      %v834 = vadd.f32 %v637, %v802
      %v835 = vadd.f32 %v638, %v803
      %v836 = vld [vmem:[%s1 + $0x3] sm:$0x1]
      %837 = vset.pattern.permute.xlu0 3
      %838 = vperm.xlu0 %837, %v174
      %v839 = vpop.permute.xlu0 %838
      %841 = vset.pattern.permute.xlu0 3
      %842 = vperm.xlu0 %841, %v175
      %v843 = vpop.permute.xlu0 %842
      %845 = vset.pattern.permute.xlu0 3
      %846 = vperm.xlu0 %845, %v176
      %v847 = vpop.permute.xlu0 %846
      %849 = vset.pattern.permute.xlu0 3
      %850 = vperm.xlu0 %849, %v177
      %v851 = vpop.permute.xlu0 %850
      %853 = vset.pattern.permute.xlu0 3
      %854 = vperm.xlu0 %853, %v178
      %v855 = vpop.permute.xlu0 %854
      %857 = vset.pattern.permute.xlu0 3
      %858 = vperm.xlu0 %857, %v179
      %v859 = vpop.permute.xlu0 %858
      %861 = vset.pattern.permute.xlu0 3
      %862 = vperm.xlu0 %861, %v180
      %v863 = vpop.permute.xlu0 %862
      %865 = vset.pattern.permute.xlu0 3
      %866 = vperm.xlu0 %865, %v181
      %v867 = vpop.permute.xlu0 %866
      %869 = vset.pattern.permute.xlu0 3
      %870 = vperm.xlu0 %869, %v182
      %v871 = vpop.permute.xlu0 %870
      %873 = vset.pattern.permute.xlu0 3
      %874 = vperm.xlu0 %873, %v183
      %v875 = vpop.permute.xlu0 %874
      %877 = vset.pattern.permute.xlu0 3
      %878 = vperm.xlu0 %877, %v184
      %v879 = vpop.permute.xlu0 %878
      %881 = vset.pattern.permute.xlu0 3
      %882 = vperm.xlu0 %881, %v185
      %v883 = vpop.permute.xlu0 %882
      %885 = vset.pattern.permute.xlu0 3
      %886 = vperm.xlu0 %885, %v186
      %v887 = vpop.permute.xlu0 %886
      %889 = vset.pattern.permute.xlu0 3
      %890 = vperm.xlu0 %889, %v187
      %v891 = vpop.permute.xlu0 %890
      %893 = vset.pattern.permute.xlu0 3
      %894 = vperm.xlu0 %893, %v188
      %v895 = vpop.permute.xlu0 %894
      %897 = vset.pattern.permute.xlu0 3
      %898 = vperm.xlu0 %897, %v189
      %v899 = vpop.permute.xlu0 %898
      %901 = vset.pattern.permute.xlu0 3
      %902 = vperm.xlu0 %901, %v190
      %v903 = vpop.permute.xlu0 %902
      %905 = vset.pattern.permute.xlu0 3
      %906 = vperm.xlu0 %905, %v191
      %v907 = vpop.permute.xlu0 %906
      %909 = vset.pattern.permute.xlu0 3
      %910 = vperm.xlu0 %909, %v192
      %v911 = vpop.permute.xlu0 %910
      %913 = vset.pattern.permute.xlu0 3
      %914 = vperm.xlu0 %913, %v193
      %v915 = vpop.permute.xlu0 %914
      %917 = vset.pattern.permute.xlu0 3
      %918 = vperm.xlu0 %917, %v194
      %v919 = vpop.permute.xlu0 %918
      %921 = vset.pattern.permute.xlu0 3
      %922 = vperm.xlu0 %921, %v195
      %v923 = vpop.permute.xlu0 %922
      %925 = vset.pattern.permute.xlu0 3
      %926 = vperm.xlu0 %925, %v196
      %v927 = vpop.permute.xlu0 %926
      %929 = vset.pattern.permute.xlu0 3
      %930 = vperm.xlu0 %929, %v197
      %v931 = vpop.permute.xlu0 %930
      %933 = vset.pattern.permute.xlu0 3
      %934 = vperm.xlu0 %933, %v198
      %v935 = vpop.permute.xlu0 %934
      %937 = vset.pattern.permute.xlu0 3
      %938 = vperm.xlu0 %937, %v199
      %v939 = vpop.permute.xlu0 %938
      %941 = vset.pattern.permute.xlu0 3
      %942 = vperm.xlu0 %941, %v200
      %v943 = vpop.permute.xlu0 %942
      %945 = vset.pattern.permute.xlu0 3
      %946 = vperm.xlu0 %945, %v201
      %v947 = vpop.permute.xlu0 %946
      %949 = vset.pattern.permute.xlu0 3
      %950 = vperm.xlu0 %949, %v202
      %v951 = vpop.permute.xlu0 %950
      %953 = vset.pattern.permute.xlu0 3
      %954 = vperm.xlu0 %953, %v203
      %v955 = vpop.permute.xlu0 %954
      %957 = vset.pattern.permute.xlu0 3
      %958 = vperm.xlu0 %957, %v204
      %v959 = vpop.permute.xlu0 %958
      %961 = vset.pattern.permute.xlu0 3
      %962 = vperm.xlu0 %961, %v205
      %v963 = vpop.permute.xlu0 %962
      %v965 = vlaneseq
      %v966 = vshrl.u32 %v965, 7
      %v967 = vsub.s32 0, %v966
      %v968 = vrot.slane %v836, %v967
      %v969 = vmul.f32 %v839, %v968
      %v970 = vmul.f32 %v843, %v968
      %v971 = vmul.f32 %v847, %v968
      %v972 = vmul.f32 %v851, %v968
      %v973 = vmul.f32 %v855, %v968
      %v974 = vmul.f32 %v859, %v968
      %v975 = vmul.f32 %v863, %v968
      %v976 = vmul.f32 %v867, %v968
      %v977 = vmul.f32 %v871, %v968
      %v978 = vmul.f32 %v875, %v968
      %v979 = vmul.f32 %v879, %v968
      %v980 = vmul.f32 %v883, %v968
      %v981 = vmul.f32 %v887, %v968
      %v982 = vmul.f32 %v891, %v968
      %v983 = vmul.f32 %v895, %v968
      %v984 = vmul.f32 %v899, %v968
      %v985 = vmul.f32 %v903, %v968
      %v986 = vmul.f32 %v907, %v968
      %v987 = vmul.f32 %v911, %v968
      %v988 = vmul.f32 %v915, %v968
      %v989 = vmul.f32 %v919, %v968
      %v990 = vmul.f32 %v923, %v968
      %v991 = vmul.f32 %v927, %v968
      %v992 = vmul.f32 %v931, %v968
      %v993 = vmul.f32 %v935, %v968
      %v994 = vmul.f32 %v939, %v968
      %v995 = vmul.f32 %v943, %v968
      %v996 = vmul.f32 %v947, %v968
      %v997 = vmul.f32 %v951, %v968
      %v998 = vmul.f32 %v955, %v968
      %v999 = vmul.f32 %v959, %v968
      %v1000 = vmul.f32 %v963, %v968
      %v1001 = vadd.f32 %v804, %v969
      %v1002 = vadd.f32 %v805, %v970
      %v1003 = vadd.f32 %v806, %v971
      %v1004 = vadd.f32 %v807, %v972
      %v1005 = vadd.f32 %v808, %v973
      %v1006 = vadd.f32 %v809, %v974
      %v1007 = vadd.f32 %v810, %v975
      %v1008 = vadd.f32 %v811, %v976
      %v1009 = vadd.f32 %v812, %v977
      %v1010 = vadd.f32 %v813, %v978
      %v1011 = vadd.f32 %v814, %v979
      %v1012 = vadd.f32 %v815, %v980
      %v1013 = vadd.f32 %v816, %v981
      %v1014 = vadd.f32 %v817, %v982
      %v1015 = vadd.f32 %v818, %v983
      %v1016 = vadd.f32 %v819, %v984
      %v1017 = vadd.f32 %v820, %v985
      %v1018 = vadd.f32 %v821, %v986
      %v1019 = vadd.f32 %v822, %v987
      %v1020 = vadd.f32 %v823, %v988
      %v1021 = vadd.f32 %v824, %v989
      %v1022 = vadd.f32 %v825, %v990
      %v1023 = vadd.f32 %v826, %v991
      %v1024 = vadd.f32 %v827, %v992
      %v1025 = vadd.f32 %v828, %v993
      %v1026 = vadd.f32 %v829, %v994
      %v1027 = vadd.f32 %v830, %v995
      %v1028 = vadd.f32 %v831, %v996
      %v1029 = vadd.f32 %v832, %v997
      %v1030 = vadd.f32 %v833, %v998
      %v1031 = vadd.f32 %v834, %v999
      %v1032 = vadd.f32 %v835, %v1000
      %vm1033 = vcmask 261120
      %1034 = vst.msk [vmem:[%s172] sm:$0xff] %vm1033, %v1001
      %1035 = vst.msk [vmem:[%s172 + $0x8] sm:$0xff] %vm1033, %v1002
      %1036 = vst.msk [vmem:[%s172 + $0x10] sm:$0xff] %vm1033, %v1003
      %1037 = vst.msk [vmem:[%s172 + $0x18] sm:$0xff] %vm1033, %v1004
      %1038 = vst.msk [vmem:[%s172 + $0x20] sm:$0xff] %vm1033, %v1005
      %1039 = vst.msk [vmem:[%s172 + $0x28] sm:$0xff] %vm1033, %v1006
      %1040 = vst.msk [vmem:[%s172 + $0x30] sm:$0xff] %vm1033, %v1007
      %1041 = vst.msk [vmem:[%s172 + $0x38] sm:$0xff] %vm1033, %v1008
      %1042 = vst.msk [vmem:[%s172 + $0x40] sm:$0xff] %vm1033, %v1009
      %1043 = vst.msk [vmem:[%s172 + $0x48] sm:$0xff] %vm1033, %v1010
      %1044 = vst.msk [vmem:[%s172 + $0x50] sm:$0xff] %vm1033, %v1011
      %1045 = vst.msk [vmem:[%s172 + $0x58] sm:$0xff] %vm1033, %v1012
      %1046 = vst.msk [vmem:[%s172 + $0x60] sm:$0xff] %vm1033, %v1013
      %1047 = vst.msk [vmem:[%s172 + $0x68] sm:$0xff] %vm1033, %v1014
      %1048 = vst.msk [vmem:[%s172 + $0x70] sm:$0xff] %vm1033, %v1015
      %1049 = vst.msk [vmem:[%s172 + $0x78] sm:$0xff] %vm1033, %v1016
      %1050 = vst.msk [vmem:[%s172 + $0x80] sm:$0xff] %vm1033, %v1017
      %1051 = vst.msk [vmem:[%s172 + $0x88] sm:$0xff] %vm1033, %v1018
      %1052 = vst.msk [vmem:[%s172 + $0x90] sm:$0xff] %vm1033, %v1019
      %1053 = vst.msk [vmem:[%s172 + $0x98] sm:$0xff] %vm1033, %v1020
      %1054 = vst.msk [vmem:[%s172 + $0xa0] sm:$0xff] %vm1033, %v1021
      %1055 = vst.msk [vmem:[%s172 + $0xa8] sm:$0xff] %vm1033, %v1022
      %1056 = vst.msk [vmem:[%s172 + $0xb0] sm:$0xff] %vm1033, %v1023
      %1057 = vst.msk [vmem:[%s172 + $0xb8] sm:$0xff] %vm1033, %v1024
      %1058 = vst.msk [vmem:[%s172 + $0xc0] sm:$0xff] %vm1033, %v1025
      %1059 = vst.msk [vmem:[%s172 + $0xc8] sm:$0xff] %vm1033, %v1026
      %1060 = vst.msk [vmem:[%s172 + $0xd0] sm:$0xff] %vm1033, %v1027
      %1061 = vst.msk [vmem:[%s172 + $0xd8] sm:$0xff] %vm1033, %v1028
      %1062 = vst.msk [vmem:[%s172 + $0xe0] sm:$0xff] %vm1033, %v1029
      %1063 = vst.msk [vmem:[%s172 + $0xe8] sm:$0xff] %vm1033, %v1030
      %1064 = vst.msk [vmem:[%s172 + $0xf0] sm:$0xff] %vm1033, %v1031
      %1065 = vst.msk [vmem:[%s172 + $0xf8] sm:$0xff] %vm1033, %v1032
      %s1066 = smul.u32 32, %s14
      %p1067 = scmp.lt.s32.totalorder %s1066, 127
      %s1068 = scalar_select %p1067, %s1066, 127
      %s1069 = smul.addr %s1068, 8
      %s1070 = scalar_lea.vmem %s3, %s1069
      // Predicated region
      $region33: #{tpu_custom_call.1} parent=31 // pred_check
        %p1071 = pneg %p100
      $region34: #{tpu_custom_call.1} parent=31 // pred_check_branch
        %1073 = sbr.rel (%p1071) target = $region36
      $region35: #{tpu_custom_call.1} parent=31 // pred_region
        %s1074 = smul.u32 32, %s14
      $region36: #{tpu_custom_call.1} parent=31 // pred_fallthru
        _
    $region32: #{tpu_custom_call.1} parent=5 // pred_fallthru
      _
    %p1075 = scmp.le.s32.totalorder 2, %s9
    // Predicated region
    $region37: #{tpu_custom_call.1} parent=5 // pred_check
      %p1076 = pneg %p1075
    $region38: #{tpu_custom_call.1} parent=5 // pred_check_branch
      %1078 = sbr.rel (%p1076) target = $region40
    $region39: #{tpu_custom_call.1} parent=5 // pred_region
      %s1079 = ssub.s32 %s9, 2
      // Predicated region
      $region41: #{tpu_custom_call.1} parent=39 // pred_check
        %p1080 = pneg %p106
      $region42: #{tpu_custom_call.1} parent=39 // pred_check_branch
        %1082 = sbr.rel (%p1080) target = $region44
      $region43: #{tpu_custom_call.1} parent=39 // pred_region
        %s1083 = smul.u32 32, %s15
        %p1084 = scmp.lt.s32.totalorder %s1083, 127
        %s1085 = scalar_select %p1084, %s1083, 127
        %s1086 = smul.addr %s1085, 8
        %s1087 = scalar_lea.vmem %s3, %s1086
      $region44: #{tpu_custom_call.1} parent=39 // pred_fallthru
        _
    $region40: #{tpu_custom_call.1} parent=5 // pred_fallthru
      _
  $region6: #{tpu_custom_call.1} parent=0 // loop_footer
    %s13 = sadd.s32 1, %s9
  $region7: #{tpu_custom_call.1} parent=0 // loop_footer_branch
    %8 = sbr.rel target = $region3
  $region8: #{tpu_custom_call.1} parent=0 // loop_exit
    _

</llo_original>
